<compile_context>
chip_gen: v6e
topology: v6e:2x2x1
jax: 0.10.0
libtpu: 0.0.40
codegen_flags: <defaults>
</compile_context>

<pallas_src>
import functools

import jax
import jax.numpy as jnp
from jax import lax
from jax.experimental import pallas as pl
from jax.experimental.pallas import tpu as pltpu


def _round_up(x, m):
    return ((x + m - 1) // m) * m


def _cdiv(a, b):
    return -(-a // b)


def _proto_span_kernel(test_ref, sup_ref, ids_ref, out_ref):
    """One grid step processes a block of `bblk` batch elements.

    test_ref: (bblk, Ltp, Dp)  mm_dtype
    sup_ref:  (bblk, SLp, Dp)  mm_dtype   (support flattened over (S, Ls))
    ids_ref:  (bblk, SLp, 1)   int32      (tag id per support token)
    out_ref:  (bblk, Ltp, Tp)  float32    (full lane-dense sim; narrowed outside)
    """
    bblk, slp, _ = sup_ref.shape
    tp = out_ref.shape[-1]
    mm_dtype = sup_ref.dtype

    # Tag-index row shared by every batch element in the block.
    # Support tokens live on sublanes, tags on lanes.
    iota_t = lax.broadcasted_iota(jnp.int32, (slp, tp), 1)

    # Small static unroll over the batch block (amortizes grid-step overhead).
    for b in range(bblk):
        ids_b = ids_ref[b]                               # (SLp, 1) int32
        hit = iota_t == ids_b                            # (SLp, Tp) bool one-hot

        # One-hot rebuilt in-kernel (exact in bf16): the big int32 one-hot
        # tensor never travels HBM->VMEM.
        onehot = hit.astype(mm_dtype)                    # (SLp, Tp)

        # sum_reps[d, t] = sum_l sup[l, d] * onehot[l, t]   (MXU, f32 acc),
        # produced directly in (D, T) layout (fuses torch.bmm + sum over S).
        sum_reps = lax.dot_general(
            sup_ref[b], onehot, (((0,), (0,)), ((), ())),
            preferred_element_type=jnp.float32)          # (Dp, Tp) f32

        # tag_count as a (1, Tp) lane row (no transpose) + remove_0() epsilon.
        tag_count = jnp.sum(hit.astype(jnp.float32), axis=0, keepdims=True) + 1e-4

        # Reciprocal-multiply instead of a (Dp, Tp)-wide divide.  approx=False
        # keeps bit-close parity with torch.div (epsilon already guards zeros).
        proto = sum_reps * pl.reciprocal(tag_count, approx=False)   # (Dp, Tp)

        # reps_dot(test, proto): canonical (Ltp, Dp) x (Dp, Tp) MXU matmul.
        sim = jnp.dot(test_ref[b], proto.astype(mm_dtype),
                      preferred_element_type=jnp.float32)           # (Ltp, Tp)

        # Full lane-dense, unmasked store; narrow(-1, 2, T-2) is in the wrapper.
        out_ref[b] = sim


def _pick_batch_block(batch):
    """Batch elements per grid step: amortize per-step overhead, but keep >=2
    parallel grid steps when possible so v7x's two TensorCores both get work
    (single-TC v5e/v6e are indifferent)."""
    bblk = min(batch, 8)
    if batch >= 2 and _cdiv(batch, bblk) < 2:
        bblk = _cdiv(batch, 2)
    return bblk


@functools.partial(jax.jit, static_argnames=("mm_dtype",))
def prototype_span_classification(test_reps, support_reps, test_output_mask,
                                  support_output_mask, support_type_target,
                                  mm_dtype=jnp.bfloat16):
    # Masks are accepted for API parity but unused by the PyTorch forward.
    del test_output_mask, support_output_mask

    batch, test_len, dim = test_reps.shape
    _, support_size, support_len, _ = support_reps.shape
    num_tags = support_type_target.shape[-1]
    sl = support_size * support_len

    # ---- wrapper-side layout plumbing (free in XLA) -------------------------
    # One-hot -> tag ids: cuts the target HBM traffic by a factor of num_tags.
    # Targets are one-hot, so argmax is lossless; an all-zero pad row maps to
    # tag 0 ([PAD]) whose column is dropped by the final narrow anyway.
    tag_ids = jnp.argmax(support_type_target, axis=-1).astype(jnp.int32)
    tag_ids = tag_ids.reshape(batch, sl, 1)

    # Flatten (S, Ls) here so the kernel never reshapes across sublane tiles.
    sup = support_reps.reshape(batch, sl, dim)

    # Pad sublane dims to x8 and lane dims to x128 (lane-dense stores, full MXU
    # tiles).  Zero-padded D contributes nothing to the dots; padded tag
    # columns only produce sim columns the final slice drops.
    bblk = _pick_batch_block(batch)
    nb = _cdiv(batch, bblk)
    bp = nb * bblk
    ltp = _round_up(test_len, 8)
    slp = _round_up(sl, 8)
    dp = _round_up(dim, 128)
    tp = _round_up(num_tags, 128)

    test_p = jnp.pad(test_reps,
                     ((0, bp - batch), (0, ltp - test_len), (0, dp - dim)))
    sup_p = jnp.pad(sup, ((0, bp - batch), (0, slp - sl), (0, dp - dim)))
    ids_p = jnp.pad(tag_ids, ((0, bp - batch), (0, slp - sl), (0, 0)))

    # bf16 MXU operands (f32 accumulation in-kernel) halve the input DMA bytes.
    test_p = test_p.astype(mm_dtype)
    sup_p = sup_p.astype(mm_dtype)

    # TODO(synk): for very large support sets (blocks approaching the scoped
    # VMEM limit, esp. on 64 MiB-VMEM v7x), add a grid axis tiling the S*Ls
    # reduction ("arbitrary") with a VMEM f32 accumulator, or an Lt tile axis.
    out_full = pl.pallas_call(
        _proto_span_kernel,
        out_shape=jax.ShapeDtypeStruct((bp, ltp, tp), jnp.float32),
        grid=(nb,),
        in_specs=[
            pl.BlockSpec((bblk, ltp, dp), lambda i: (i, 0, 0)),
            pl.BlockSpec((bblk, slp, dp), lambda i: (i, 0, 0)),
            pl.BlockSpec((bblk, slp, 1), lambda i: (i, 0, 0)),
        ],
        out_specs=pl.BlockSpec((bblk, ltp, tp), lambda i: (i, 0, 0)),
        compiler_params=pltpu.CompilerParams(
            dimension_semantics=("parallel",)),
    )(test_p, sup_p, ids_p)

    # get_output: narrow(-1, 2, T-2) + un-pad, outside the kernel so the store
    # path stays lane-dense/unmasked.
    return out_full[:batch, :test_len, 2:num_tags]
    # TODO(synk): self.scaler is None in this config; an L1 scaler would be a
    # single extra normalize step here (or fused into the kernel epilogue).


def _reference_f32(test_reps, support_reps, support_type_target):
    """Pure-JAX f32 mirror of the PyTorch forward."""
    b, _, d = test_reps.shape
    _, s, ls, _ = support_reps.shape
    t = support_type_target.shape[-1]
    hi = jax.lax.Precision.HIGHEST
    sup = support_reps.reshape(b, s * ls, d)
    tgt = support_type_target.reshape(b, s * ls, t).astype(jnp.float32)
    sum_reps = jnp.einsum('blt,bld->btd', tgt, sup, precision=hi)
    tag_count = tgt.sum(axis=1)[..., None] + 1e-4
    proto = sum_reps / tag_count
    sim = jnp.einsum('bqd,btd->bqt', test_reps, proto, precision=hi)
    return sim[..., 2:]


def _reference_matched(test_reps, support_reps, support_type_target, mm_dtype):
    """Same math, mirroring the kernel's MXU operand dtype (f32 accumulation)."""
    b, _, d = test_reps.shape
    _, s, ls, _ = support_reps.shape
    t = support_type_target.shape[-1]
    sup = support_reps.reshape(b, s * ls, d).astype(mm_dtype)
    tgt = support_type_target.reshape(b, s * ls, t)
    onehot = tgt.astype(mm_dtype)                      # exact: values are 0/1
    sum_reps = jnp.einsum('blt,bld->btd', onehot, sup,
                          preferred_element_type=jnp.float32)
    tag_count = tgt.astype(jnp.float32).sum(axis=1)[..., None] + 1e-4
    proto = (sum_reps / tag_count).astype(mm_dtype)
    sim = jnp.einsum('bqd,btd->bqt', test_reps.astype(mm_dtype), proto,
                     preferred_element_type=jnp.float32)
    return sim[..., 2:]


if __name__ == "__main__":
    B, S, Lt, Ls, D, T = 2, 2, 8, 8, 32, 6

    key = jax.random.PRNGKey(0)
    k1, k2, k3 = jax.random.split(key, 3)

    test_reps = jax.random.normal(k1, (B, Lt, D), dtype=jnp.float32)
    support_reps = jax.random.normal(k2, (B, S, Ls, D), dtype=jnp.float32)
    tag_ids = jax.random.randint(k3, (B, S, Ls), 0, T)
    support_type_target = jax.nn.one_hot(tag_ids, T, dtype=jnp.int32)
    test_output_mask = jnp.ones((B, Lt), dtype=jnp.int32)
    support_output_mask = jnp.ones((B, S, Ls), dtype=jnp.int32)

    # Default path: bf16 MXU operands, f32 accumulation.
    out = prototype_span_classification(
        test_reps, support_reps, test_output_mask, support_output_mask,
        support_type_target)
    out = jax.block_until_ready(out)
    assert out.shape == (B, Lt, T - 2), out.shape

    ref_bf16 = _reference_matched(test_reps, support_reps, support_type_target,
                                  jnp.bfloat16)
    assert jnp.allclose(out, ref_bf16, atol=5e-3, rtol=5e-3), \
        float(jnp.max(jnp.abs(out - ref_bf16)))

    # f32 path: exact parity with the torch f32 forward.
    out_f32 = prototype_span_classification(
        test_reps, support_reps, test_output_mask, support_output_mask,
        support_type_target, mm_dtype=jnp.float32)
    out_f32 = jax.block_until_ready(out_f32)
    ref = _reference_f32(test_reps, support_reps, support_type_target)
    assert jnp.allclose(out_f32, ref, atol=1e-4, rtol=1e-4), \
        float(jnp.max(jnp.abs(out_f32 - ref)))

    print("KERNEL_OK")
</pallas_src>

<mosaic_0001>
module attributes {stable_mosaic.version = 11 : i64} {
  func.func @_proto_span_kernel(%arg0: i32, %arg1: memref<1x8x128xbf16, #tpu.memory_space<vmem>>, %arg2: memref<1x16x128xbf16, #tpu.memory_space<vmem>>, %arg3: memref<1x16x1xi32, #tpu.memory_space<vmem>>, %arg4: memref<1x8x128xf32, #tpu.memory_space<vmem>>) attributes {dimension_semantics = [#tpu.dimension_semantics<parallel>], iteration_bounds = array<i64: 2>, scalar_prefetch = 0 : i64, scratch_operands = 0 : i64, tpu.core_type = #tpu.core_type<tc>, window_params = [{transform_indices = @transform_0, window_bounds = array<i64: 1, 8, 128>}, {transform_indices = @transform_1, window_bounds = array<i64: 1, 16, 128>}, {transform_indices = @transform_2, window_bounds = array<i64: 1, 16, 1>}, {transform_indices = @transform_3, window_bounds = array<i64: 1, 8, 128>}]} {
    %0 = tpu.iota {dimensions = array<i32: 1>} : vector<16x128xi32>
    %c0 = arith.constant 0 : index
    %c0_0 = arith.constant 0 : index
    %c0_1 = arith.constant 0 : index
    %1 = vector.load %arg3[%c0, %c0_0, %c0_1] : memref<1x16x1xi32, #tpu.memory_space<vmem>>, vector<1x16x1xi32>
    %2 = vector.shape_cast %1 : vector<1x16x1xi32> to vector<16x1xi32>
    %3 = vector.broadcast %2 : vector<16x1xi32> to vector<16x128xi32>
    %4 = arith.cmpi eq, %0, %3 : vector<16x128xi32>
    %5 = arith.extui %4 : vector<16x128xi1> to vector<16x128xi32>
    %6 = arith.sitofp %5 : vector<16x128xi32> to vector<16x128xf32>
    %7 = arith.truncf %6 : vector<16x128xf32> to vector<16x128xbf16>
    %c0_2 = arith.constant 0 : index
    %c0_3 = arith.constant 0 : index
    %c0_4 = arith.constant 0 : index
    %8 = vector.load %arg2[%c0_2, %c0_3, %c0_4] : memref<1x16x128xbf16, #tpu.memory_space<vmem>>, vector<1x16x128xbf16>
    %9 = vector.shape_cast %8 : vector<1x16x128xbf16> to vector<16x128xbf16>
    %cst = arith.constant dense<0.000000e+00> : vector<128x128xf32>
    %10 = tpu.matmul %9, %7, %cst {dimension_numbers = #tpu.dot_dimension_numbers<[0], [0], [1], [1], [0, 1, 1, 1], [], []>} : vector<16x128xbf16>, vector<16x128xbf16>, vector<128x128xf32> -> vector<128x128xf32>
    %11 = arith.extui %4 : vector<16x128xi1> to vector<16x128xi32>
    %12 = arith.sitofp %11 : vector<16x128xi32> to vector<16x128xf32>
    %cst_5 = arith.constant dense<0.000000e+00> : vector<128xf32>
    %13 = vector.multi_reduction <add>, %12, %cst_5 [0] : vector<16x128xf32> to vector<128xf32>
    %14 = vector.shape_cast %13 : vector<128xf32> to vector<1x128xf32>
    %cst_6 = arith.constant 9.99999974E-5 : f32
    %15 = vector.broadcast %cst_6 : f32 to vector<1x128xf32>
    %16 = arith.addf %14, %15 : vector<1x128xf32>
    %17 = tpu.reciprocal %16 : vector<1x128xf32> -> vector<1x128xf32>
    %18 = vector.broadcast %17 : vector<1x128xf32> to vector<128x128xf32>
    %19 = arith.mulf %10, %18 : vector<128x128xf32>
    %c0_7 = arith.constant 0 : index
    %c0_8 = arith.constant 0 : index
    %c0_9 = arith.constant 0 : index
    %20 = vector.load %arg1[%c0_7, %c0_8, %c0_9] : memref<1x8x128xbf16, #tpu.memory_space<vmem>>, vector<1x8x128xbf16>
    %21 = vector.shape_cast %20 : vector<1x8x128xbf16> to vector<8x128xbf16>
    %22 = arith.truncf %19 : vector<128x128xf32> to vector<128x128xbf16>
    %cst_10 = arith.constant dense<0.000000e+00> : vector<8x128xf32>
    %23 = tpu.matmul %21, %22, %cst_10 {dimension_numbers = #tpu.dot_dimension_numbers<[1], [0], [0], [1], [0, 0, 1, 1], [], []>} : vector<8x128xbf16>, vector<128x128xbf16>, vector<8x128xf32> -> vector<8x128xf32>
    %c0_11 = arith.constant 0 : index
    %c0_12 = arith.constant 0 : index
    %c0_13 = arith.constant 0 : index
    %24 = vector.load %arg4[%c0_11, %c0_12, %c0_13] : memref<1x8x128xf32, #tpu.memory_space<vmem>>, vector<1x8x128xf32>
    %25 = vector.shape_cast %24 : vector<1x8x128xf32> to vector<8x128xf32>
    %26 = vector.shape_cast %23 : vector<8x128xf32> to vector<1x8x128xf32>
    tpu.vector_store %arg4[%c0_11, %c0_12, %c0_13], %26 {strides = array<i32>} : memref<1x8x128xf32, #tpu.memory_space<vmem>>, vector<1x8x128xf32>,
    return
  }
  func.func @transform_0(%arg0: i32) -> (i32, i32, i32) {
    %c0_i32 = arith.constant 0 : i32
    %c0_i32_0 = arith.constant 0 : i32
    %c0_i32_1 = arith.constant 0 : i32
    return %arg0, %c0_i32, %c0_i32_0 : i32, i32, i32
  }
  func.func @transform_1(%arg0: i32) -> (i32, i32, i32) {
    %c0_i32 = arith.constant 0 : i32
    %c0_i32_0 = arith.constant 0 : i32
    %c0_i32_1 = arith.constant 0 : i32
    return %arg0, %c0_i32, %c0_i32_0 : i32, i32, i32
  }
  func.func @transform_2(%arg0: i32) -> (i32, i32, i32) {
    %c0_i32 = arith.constant 0 : i32
    %c0_i32_0 = arith.constant 0 : i32
    %c0_i32_1 = arith.constant 0 : i32
    return %arg0, %c0_i32, %c0_i32_0 : i32, i32, i32
  }
  func.func @transform_3(%arg0: i32) -> (i32, i32, i32) {
    %c0_i32 = arith.constant 0 : i32
    %c0_i32_0 = arith.constant 0 : i32
    %c0_i32_1 = arith.constant 0 : i32
    return %arg0, %c0_i32, %c0_i32_0 : i32, i32, i32
  }
}

</mosaic_0001>

<llo_original>
// kernel: prototype_span_classification.1
$region0: #{prototype_span_classification.1}
  #allocation0 [shape = 'u32[]', space=smem, size = 0x4, offset = 0x4, fixed_abs, tag = 'smem constant byte address 0x4 - core index']
  #allocation1 [shape = 'u32[144,128]{1,0:T(1,128)}', space=vmem, size = 0x12000, scoped, tag = 'internal scratch']
  %s0 = inlined_call_operand.vmem [shape: bf16[2,8,128], index: 0, kind: input, shape index: {}]
  %s1 = inlined_call_operand.vmem [shape: bf16[2,16,128], index: 1, kind: input, shape index: {}]
  %s2 = inlined_call_operand.vmem [shape: s32[2,16,1], index: 2, kind: input, shape index: {}]
  %s3 = inlined_call_operand.vmem [shape: f32[2,8,128], index: 3, kind: output, shape index: {}]
  %s4 = sld [smem:[#allocation0]]
  $region45: #{prototype_span_classification.1} parent=0
    _
  %s6 = ssub.s32 1, %s4
  %s7 = scalar_select 0, %s6, %s4
  loop: start=0, step=1, limit=4
  $region2: #{prototype_span_classification.1} parent=0 // loop_pre_header
    _
  $region3: #{prototype_span_classification.1} parent=0 // loop_header
    %s9 = sphi 0, %s13
    %p10 = scmp.ge.s32.totalorder %s9, 4
    %s19 = sphi 0, %s21
    %s22 = sphi 0, %s19
    %s23 = sphi 0, %s22
    %s39 = sphi 0, %s23
    %s45 = sphi 0, %s47
    %s48 = sphi 0, %s45
    %s49 = sphi 0, %s48
    %s65 = sphi 0, %s49
    %s71 = sphi 0, %s73
    %s74 = sphi 0, %s71
    %s75 = sphi 0, %s74
    %s91 = sphi 0, %s75
    %s97 = sphi 0, %s99
    %s100 = sphi 0, %s97
    %s101 = sphi 0, %s100
    %s117 = sphi 0, %s101
  $region4: #{prototype_span_classification.1} parent=0 // loop_header_branch
    %12 = sbr.rel (%p10) target = $region8
  $region5: #{prototype_span_classification.1} parent=0 // loop_body
    %s14 = ssub.s32 %s9, 1
    %s15 = ssub.s32 %s9, 2
    %s16 = sadd.s32 %s9, 1
    %s17 = ssub.s32 %s9, %s16
    %p18 = scmp.eq.s32.totalorder %s17, 0
    %s20 = sadd.s32 %s19, 1
    %s21 = scalar_select %p18, %s19, %s20
    %p24 = pneg %p18
    %p25 = scmp.eq.s32.totalorder %s9, 1
    %p26 = por %p24, %p25
    %p27 = scmp.ne.s32.totalorder %s19, %s22
    %p28 = scmp.eq.s32.totalorder %s9, 0
    %p29 = por %p27, %p28
    %p30 = scmp.ne.s32.totalorder %s19, %s22
    %p31 = scmp.eq.s32.totalorder %s14, 1
    %p32 = por %p30, %p31
    %p33 = scmp.ne.s32.totalorder %s22, %s23
    %p34 = scmp.eq.s32.totalorder %s14, 0
    %p35 = por %p33, %p34
    %p36 = scmp.ne.s32.totalorder %s22, %s23
    %p37 = scmp.eq.s32.totalorder %s15, 1
    %p38 = por %p36, %p37
    %p40 = scmp.ne.s32.totalorder %s23, %s39
    %p41 = scmp.eq.s32.totalorder %s15, 0
    %p42 = por %p40, %p41
    %s43 = ssub.s32 %s9, %s16
    %p44 = scmp.eq.s32.totalorder %s43, 0
    %s46 = sadd.s32 %s45, 1
    %s47 = scalar_select %p44, %s45, %s46
    %p50 = pneg %p44
    %p51 = scmp.eq.s32.totalorder %s9, 1
    %p52 = por %p50, %p51
    %p53 = scmp.ne.s32.totalorder %s45, %s48
    %p54 = scmp.eq.s32.totalorder %s9, 0
    %p55 = por %p53, %p54
    %p56 = scmp.ne.s32.totalorder %s45, %s48
    %p57 = scmp.eq.s32.totalorder %s14, 1
    %p58 = por %p56, %p57
    %p59 = scmp.ne.s32.totalorder %s48, %s49
    %p60 = scmp.eq.s32.totalorder %s14, 0
    %p61 = por %p59, %p60
    %p62 = scmp.ne.s32.totalorder %s48, %s49
    %p63 = scmp.eq.s32.totalorder %s15, 1
    %p64 = por %p62, %p63
    %p66 = scmp.ne.s32.totalorder %s49, %s65
    %p67 = scmp.eq.s32.totalorder %s15, 0
    %p68 = por %p66, %p67
    %s69 = ssub.s32 %s9, %s16
    %p70 = scmp.eq.s32.totalorder %s69, 0
    %s72 = sadd.s32 %s71, 1
    %s73 = scalar_select %p70, %s71, %s72
    %p76 = pneg %p70
    %p77 = scmp.eq.s32.totalorder %s9, 1
    %p78 = por %p76, %p77
    %p79 = scmp.ne.s32.totalorder %s71, %s74
    %p80 = scmp.eq.s32.totalorder %s9, 0
    %p81 = por %p79, %p80
    %p82 = scmp.ne.s32.totalorder %s71, %s74
    %p83 = scmp.eq.s32.totalorder %s14, 1
    %p84 = por %p82, %p83
    %p85 = scmp.ne.s32.totalorder %s74, %s75
    %p86 = scmp.eq.s32.totalorder %s14, 0
    %p87 = por %p85, %p86
    %p88 = scmp.ne.s32.totalorder %s74, %s75
    %p89 = scmp.eq.s32.totalorder %s15, 1
    %p90 = por %p88, %p89
    %p92 = scmp.ne.s32.totalorder %s75, %s91
    %p93 = scmp.eq.s32.totalorder %s15, 0
    %p94 = por %p92, %p93
    %s95 = ssub.s32 %s9, %s16
    %p96 = scmp.eq.s32.totalorder %s95, 0
    %s98 = sadd.s32 %s97, 1
    %s99 = scalar_select %p96, %s97, %s98
    %p102 = pneg %p96
    %p103 = scmp.eq.s32.totalorder %s9, 1
    %p104 = por %p102, %p103
    %p105 = scmp.ne.s32.totalorder %s97, %s100
    %p106 = scmp.eq.s32.totalorder %s9, 0
    %p107 = por %p105, %p106
    %p108 = scmp.ne.s32.totalorder %s97, %s100
    %p109 = scmp.eq.s32.totalorder %s14, 1
    %p110 = por %p108, %p109
    %p111 = scmp.ne.s32.totalorder %s100, %s101
    %p112 = scmp.eq.s32.totalorder %s14, 0
    %p113 = por %p111, %p112
    %p114 = scmp.ne.s32.totalorder %s100, %s101
    %p115 = scmp.eq.s32.totalorder %s15, 1
    %p116 = por %p114, %p115
    %p118 = scmp.ne.s32.totalorder %s101, %s117
    %p119 = scmp.eq.s32.totalorder %s15, 0
    %p120 = por %p118, %p119
    %p121 = scmp.le.s32.totalorder 1, %s9
    %p122 = scmp.lt.s32.totalorder %s9, 3
    %p123 = pnand %p121, %p122
    %p124 = pneg %p123
    // Predicated region
    $region9: #{prototype_span_classification.1} parent=5 // pred_check
      _
    $region10: #{prototype_span_classification.1} parent=5 // pred_check_branch
      %126 = sbr.rel (%p123) target = $region12
    $region11: #{prototype_span_classification.1} parent=5 // pred_region
      %s127 = ssub.s32 %s9, 1
    $region12: #{prototype_span_classification.1} parent=5 // pred_fallthru
      _
    %p128 = scmp.lt.s32.totalorder %s9, 2
    // Predicated region
    $region13: #{prototype_span_classification.1} parent=5 // pred_check
      %p129 = pneg %p128
    $region14: #{prototype_span_classification.1} parent=5 // pred_check_branch
      %131 = sbr.rel (%p129) target = $region16
    $region15: #{prototype_span_classification.1} parent=5 // pred_region
      // Predicated region
      $region17: #{prototype_span_classification.1} parent=15 // pred_check
        %p132 = pneg %p29
      $region18: #{prototype_span_classification.1} parent=15 // pred_check_branch
        %134 = sbr.rel (%p132) target = $region20
      $region19: #{prototype_span_classification.1} parent=15 // pred_region
        %p135 = scmp.lt.s32.totalorder %s9, 1
        %s136 = scalar_select %p135, %s9, 1
        %s137 = smul.addr %s136, 4
        %s138 = scalar_lea.vmem %s0, %s137
      $region20: #{prototype_span_classification.1} parent=15 // pred_fallthru
        _
      // Predicated region
      $region21: #{prototype_span_classification.1} parent=15 // pred_check
        %p139 = pneg %p55
      $region22: #{prototype_span_classification.1} parent=15 // pred_check_branch
        %141 = sbr.rel (%p139) target = $region24
      $region23: #{prototype_span_classification.1} parent=15 // pred_region
        %p142 = scmp.lt.s32.totalorder %s9, 1
        %s143 = scalar_select %p142, %s9, 1
        %s144 = smul.addr %s143, 2
        %s145 = smul.addr %s144, 4
        %s146 = scalar_lea.vmem %s1, %s145
      $region24: #{prototype_span_classification.1} parent=15 // pred_fallthru
        _
      // Predicated region
      $region25: #{prototype_span_classification.1} parent=15 // pred_check
        %p147 = pneg %p81
      $region26: #{prototype_span_classification.1} parent=15 // pred_check_branch
        %149 = sbr.rel (%p147) target = $region28
      $region27: #{prototype_span_classification.1} parent=15 // pred_region
        %p150 = scmp.lt.s32.totalorder %s9, 1
        %s151 = scalar_select %p150, %s9, 1
        %s152 = smul.addr %s151, 2
        %s153 = smul.addr %s152, 8
        %s154 = scalar_lea.vmem %s2, %s153
      $region28: #{prototype_span_classification.1} parent=15 // pred_fallthru
        _
    $region16: #{prototype_span_classification.1} parent=5 // pred_fallthru
      _
    %p155 = scmp.le.s32.totalorder 1, %s9
    %p156 = scmp.lt.s32.totalorder %s9, 3
    %p157 = pnand %p155, %p156
    %p158 = pneg %p157
    // Predicated region
    $region29: #{prototype_span_classification.1} parent=5 // pred_check
      _
    $region30: #{prototype_span_classification.1} parent=5 // pred_check_branch
      %160 = sbr.rel (%p157) target = $region32
    $region31: #{prototype_span_classification.1} parent=5 // pred_region
      %s161 = ssub.s32 %s9, 1
      %p162 = scmp.lt.s32.totalorder %s14, 1
      %s163 = scalar_select %p162, %s14, 1
      %s164 = smul.addr %s163, 4
      %s165 = scalar_lea.vmem %s0, %s164
      %p166 = pneg %p35
      %p167 = pneg %p32
      %p168 = scmp.lt.s32.totalorder %s14, 1
      %s169 = scalar_select %p168, %s14, 1
      %s170 = smul.addr %s169, 2
      %s171 = smul.addr %s170, 4
      %s172 = scalar_lea.vmem %s1, %s171
      %p173 = pneg %p61
      %p174 = pneg %p58
      %p175 = scmp.lt.s32.totalorder %s14, 1
      %s176 = scalar_select %p175, %s14, 1
      %s177 = smul.addr %s176, 2
      %s178 = smul.addr %s177, 8
      %s179 = scalar_lea.vmem %s2, %s178
      %p180 = pneg %p87
      %p181 = pneg %p84
      %p182 = pneg %p113
      %p183 = pneg %p110
      %p184 = scmp.lt.s32.totalorder %s14, 1
      %s185 = scalar_select %p184, %s14, 1
      %s186 = smul.addr %s185, 8
      %s187 = scalar_lea.vmem %s3, %s186
      %p188 = scmp.lt.s32.totalorder %s14, 1
      %s189 = scalar_select %p188, %s14, 1
      %s190 = smul.addr %s189, 4
      %s191 = scalar_lea.vmem %s0, %s190
      %p192 = scmp.lt.s32.totalorder %s14, 1
      %s193 = scalar_select %p192, %s14, 1
      %s194 = smul.addr %s193, 2
      %s195 = smul.addr %s194, 4
      %s196 = scalar_lea.vmem %s1, %s195
      %p197 = scmp.lt.s32.totalorder %s14, 1
      %s198 = scalar_select %p197, %s14, 1
      %s199 = smul.addr %s198, 2
      %s200 = smul.addr %s199, 8
      %s201 = scalar_lea.vmem %s2, %s200
      %p202 = scmp.lt.s32.totalorder %s14, 1
      %s203 = scalar_select %p202, %s14, 1
      %s204 = smul.addr %s203, 8
      %s205 = scalar_lea.vmem %s3, %s204
      %v207 = vlaneseq
      %v208 = vand.u32 %v207, 127
      %v209 = vld [vmem:[%s201] sm:$0xff]
      %v210 = vld [vmem:[%s201 + $0x8] sm:$0xff]
      %211 = vset.pattern.permute.xlu0 0
      %212 = vperm.xlu0 %211, %v209
      %v213 = vpop.permute.xlu0 %212
      %214 = vset.pattern.permute.xlu0 0
      %215 = vperm.xlu0 %214, %v210
      %v216 = vpop.permute.xlu0 %215
      %vm217 = vcmp.eq.s32.totalorder %v208, %v213
      %vm218 = vcmp.eq.s32.totalorder %v208, %v216
      %v219 = vsel %vm217, 1, 0
      %v220 = vsel %vm218, 1, 0
      %v221 = vcvt.s32.f32 %v219
      %v222 = vcvt.s32.f32 %v220
      %v223 = vpack.c.bf16 %v222, %v221
      %v224 = vld [vmem:[%s196] sm:$0xf]
      %v225 = vld [vmem:[%s196 + $0x4] sm:$0xf]
      %v228 = vunpack.c.l.b16 %v224
      %v229 = vunpack.c.l.b16 %v225
      %v230 = vpack.c.b16 %v229, %v228
      %232 = vxpose.xlu0.c.b16.start [1/8] %v230, 128
      %233 = vxpose.xlu0.c.b16.cont [2/8] 0, 128
      %234 = vxpose.xlu0.c.b16.cont [3/8] 0, 128
      %235 = vxpose.xlu0.c.b16.cont [4/8] 0, 128
      %236 = vxpose.xlu0.c.b16.cont [5/8] 0, 128
      %237 = vxpose.xlu0.c.b16.cont [6/8] 0, 128
      %238 = vxpose.xlu0.c.b16.cont [7/8] 0, 128
      %239 = vxpose.xlu0.c.b16.end [8/8] 0, 128
      %v240 = vpop.trf.xlu0
      %v241 = vpop.trf.xlu0
      %v242 = vpop.trf.xlu0
      %v243 = vpop.trf.xlu0
      %v244 = vpop.trf.xlu0
      %v245 = vpop.trf.xlu0
      %v246 = vpop.trf.xlu0
      %v247 = vpop.trf.xlu0
      %vm248 = vcmask 130048
      %v250 = vsel %vm248, %v240, 0
      %v253 = vsel %vm248, %v241, 0
      %v256 = vsel %vm248, %v242, 0
      %v259 = vsel %vm248, %v243, 0
      %v262 = vsel %vm248, %v244, 0
      %v265 = vsel %vm248, %v245, 0
      %v268 = vsel %vm248, %v246, 0
      %v271 = vsel %vm248, %v247, 0
      %273 = vmatprep.subr.bf16.mxu0 0
      %274 = vmatpush1.bf16.msra.mxu0 0
      %275 = vmatprep.subr.bf16.mxu0 0
      %276 = vmatpush1.bf16.msra.mxu0 0
      %277 = vmatprep.subr.bf16.mxu0 0
      %278 = vmatpush1.bf16.msra.mxu0 0
      %279 = vmatprep.subr.bf16.mxu0 0
      %280 = vmatpush1.bf16.msra.mxu0 0
      %281 = vmatprep.subr.bf16.mxu0 0
      %282 = vmatpush1.bf16.msra.mxu0 0
      %283 = vmatprep.subr.bf16.mxu0 0
      %284 = vmatpush1.bf16.msra.mxu0 0
      %285 = vmatprep.subr.bf16.mxu0 0
      %286 = vmatpush1.bf16.msra.mxu0 0
      %287 = vmatprep.subr.bf16.mxu0 0
      %288 = vmatpush1.bf16.msra.mxu0 %v223
      %289 = vmatprep.subr.bf16.mxu0 0
      %290 = vmatpush2.bf16.msra.mxu0 0
      %291 = vmatprep.subr.bf16.mxu0 0
      %292 = vmatpush2.bf16.msra.mxu0 0
      %293 = vmatprep.subr.bf16.mxu0 0
      %294 = vmatpush2.bf16.msra.mxu0 0
      %295 = vmatprep.subr.bf16.mxu0 0
      %296 = vmatpush2.bf16.msra.mxu0 0
      %297 = vmatprep.subr.bf16.mxu0 0
      %298 = vmatpush2.bf16.msra.mxu0 0
      %299 = vmatprep.subr.bf16.mxu0 0
      %300 = vmatpush2.bf16.msra.mxu0 0
      %301 = vmatprep.subr.bf16.mxu0 0
      %302 = vmatpush2.bf16.msra.mxu0 0
      %303 = vmatprep.subr.bf16.mxu0 0
      %304 = vmatpush2.bf16.msra.mxu0 0
      %305 = vmatprep.mubr.bf16.mxu0 0
      %306 = vmatmul.mubr.bf16.gmra.mxu0 %v250
      %v307 = vpop.f32.mrf.mxu0
      %v308 = vadd.f32 0.0, %v307
      %v309 = vpop.f32.mrf.mxu0
      %v310 = vpop.f32.mrf.mxu0
      %v311 = vadd.f32 0.0, %v310
      %v312 = vpop.f32.mrf.mxu0
      %313 = vmatprep.mubr.bf16.mxu0 0
      %314 = vmatmul.mubr.bf16.gmra.mxu0 %v253
      %v315 = vpop.f32.mrf.mxu0
      %v316 = vadd.f32 0.0, %v315
      %v317 = vpop.f32.mrf.mxu0
      %v318 = vpop.f32.mrf.mxu0
      %v319 = vadd.f32 0.0, %v318
      %v320 = vpop.f32.mrf.mxu0
      %321 = vmatprep.mubr.bf16.mxu0 0
      %322 = vmatmul.mubr.bf16.gmra.mxu0 %v256
      %v323 = vpop.f32.mrf.mxu0
      %v324 = vadd.f32 0.0, %v323
      %v325 = vpop.f32.mrf.mxu0
      %v326 = vpop.f32.mrf.mxu0
      %v327 = vadd.f32 0.0, %v326
      %v328 = vpop.f32.mrf.mxu0
      %329 = vmatprep.mubr.bf16.mxu0 0
      %330 = vmatmul.mubr.bf16.gmra.mxu0 %v259
      %v331 = vpop.f32.mrf.mxu0
      %v332 = vadd.f32 0.0, %v331
      %v333 = vpop.f32.mrf.mxu0
      %v334 = vpop.f32.mrf.mxu0
      %v335 = vadd.f32 0.0, %v334
      %v336 = vpop.f32.mrf.mxu0
      %337 = vmatprep.mubr.bf16.mxu0 0
      %338 = vmatmul.mubr.bf16.gmra.mxu0 %v262
      %v339 = vpop.f32.mrf.mxu0
      %v340 = vadd.f32 0.0, %v339
      %v341 = vpop.f32.mrf.mxu0
      %v342 = vpop.f32.mrf.mxu0
      %v343 = vadd.f32 0.0, %v342
      %v344 = vpop.f32.mrf.mxu0
      %345 = vmatprep.mubr.bf16.mxu0 0
      %346 = vmatmul.mubr.bf16.gmra.mxu0 %v265
      %v347 = vpop.f32.mrf.mxu0
      %v348 = vadd.f32 0.0, %v347
      %v349 = vpop.f32.mrf.mxu0
      %v350 = vpop.f32.mrf.mxu0
      %v351 = vadd.f32 0.0, %v350
      %v352 = vpop.f32.mrf.mxu0
      %353 = vmatprep.mubr.bf16.mxu0 0
      %354 = vmatmul.mubr.bf16.gmra.mxu0 %v268
      %v355 = vpop.f32.mrf.mxu0
      %v356 = vadd.f32 0.0, %v355
      %v357 = vpop.f32.mrf.mxu0
      %v358 = vpop.f32.mrf.mxu0
      %v359 = vadd.f32 0.0, %v358
      %v360 = vpop.f32.mrf.mxu0
      %361 = vmatprep.mubr.bf16.mxu0 0
      %362 = vmatmul.mubr.bf16.gmra.mxu0 %v271
      %v363 = vpop.f32.mrf.mxu0
      %v364 = vadd.f32 0.0, %v363
      %v365 = vpop.f32.mrf.mxu0
      %v366 = vpop.f32.mrf.mxu0
      %v367 = vadd.f32 0.0, %v366
      %v368 = vpop.f32.mrf.mxu0
      %369 = vdwg.mxu0
      %v370 = vadd.f32 %v221, %v222
      %v371 = vrot.slane %v370, 4
      %v372 = vadd.f32 %v370, %v371
      %v373 = vrot.slane %v372, 2
      %v374 = vadd.f32 %v372, %v373
      %v375 = vrot.slane %v374, 1
      %v376 = vadd.f32 %v374, %v375
      %v377 = vadd.f32 %v376, 0.0001
      %v378 = vrcp.pop %v377
      %v379 = vmul.f32 %v308, %v378
      %v380 = vmul.f32 %v311, %v378
      %v381 = vmul.f32 %v316, %v378
      %v382 = vmul.f32 %v319, %v378
      %v383 = vmul.f32 %v324, %v378
      %v384 = vmul.f32 %v327, %v378
      %v385 = vmul.f32 %v332, %v378
      %v386 = vmul.f32 %v335, %v378
      %v387 = vmul.f32 %v340, %v378
      %v388 = vmul.f32 %v343, %v378
      %v389 = vmul.f32 %v348, %v378
      %v390 = vmul.f32 %v351, %v378
      %v391 = vmul.f32 %v356, %v378
      %v392 = vmul.f32 %v359, %v378
      %v393 = vmul.f32 %v364, %v378
      %v394 = vmul.f32 %v367, %v378
      %v395 = vld [vmem:[%s191] sm:$0xf]
      %v396 = vpack.c.bf16 %v380, %v379
      %v397 = vpack.c.bf16 %v382, %v381
      %v398 = vpack.c.bf16 %v384, %v383
      %v399 = vpack.c.bf16 %v386, %v385
      %v400 = vpack.c.bf16 %v388, %v387
      %v401 = vpack.c.bf16 %v390, %v389
      %v402 = vpack.c.bf16 %v392, %v391
      %v403 = vpack.c.bf16 %v394, %v393
      %404 = vmatprep.subr.bf16.mxu0 0
      %405 = vmatpush1.bf16.msra.mxu0 %v403
      %406 = vmatprep.subr.bf16.mxu0 0
      %407 = vmatpush1.bf16.msra.mxu0 %v402
      %408 = vmatprep.subr.bf16.mxu0 0
      %409 = vmatpush1.bf16.msra.mxu0 %v401
      %410 = vmatprep.subr.bf16.mxu0 0
      %411 = vmatpush1.bf16.msra.mxu0 %v400
      %412 = vmatprep.subr.bf16.mxu0 0
      %413 = vmatpush1.bf16.msra.mxu0 %v399
      %414 = vmatprep.subr.bf16.mxu0 0
      %415 = vmatpush1.bf16.msra.mxu0 %v398
      %416 = vmatprep.subr.bf16.mxu0 0
      %417 = vmatpush1.bf16.msra.mxu0 %v397
      %418 = vmatprep.subr.bf16.mxu0 0
      %419 = vmatpush1.bf16.msra.mxu0 %v396
      %420 = vmatprep.subr.bf16.mxu0 0
      %421 = vmatpush2.bf16.msra.mxu0 0
      %422 = vmatprep.subr.bf16.mxu0 0
      %423 = vmatpush2.bf16.msra.mxu0 0
      %424 = vmatprep.subr.bf16.mxu0 0
      %425 = vmatpush2.bf16.msra.mxu0 0
      %426 = vmatprep.subr.bf16.mxu0 0
      %427 = vmatpush2.bf16.msra.mxu0 0
      %428 = vmatprep.subr.bf16.mxu0 0
      %429 = vmatpush2.bf16.msra.mxu0 0
      %430 = vmatprep.subr.bf16.mxu0 0
      %431 = vmatpush2.bf16.msra.mxu0 0
      %432 = vmatprep.subr.bf16.mxu0 0
      %433 = vmatpush2.bf16.msra.mxu0 0
      %434 = vmatprep.subr.bf16.mxu0 0
      %435 = vmatpush2.bf16.msra.mxu0 0
      %436 = vmatprep.mubr.bf16.mxu0 0
      %437 = vmatmul.mubr.bf16.gmra.mxu0 %v395
      %v438 = vpop.f32.mrf.mxu0
      %v439 = vadd.f32 0.0, %v438
      %v440 = vpop.f32.mrf.mxu0
      %v441 = vpop.f32.mrf.mxu0
      %v442 = vpop.f32.mrf.mxu0
      %443 = vdwg.mxu0
      %444 = vst [vmem:[%s205] sm:$0xff] %v439
      %p445 = scmp.lt.s32.totalorder %s14, 1
      %s446 = scalar_select %p445, %s14, 1
      %s447 = smul.addr %s446, 8
      %s448 = scalar_lea.vmem %s3, %s447
      // Predicated region
      $region33: #{prototype_span_classification.1} parent=31 // pred_check
        %p449 = pneg %p110
      $region34: #{prototype_span_classification.1} parent=31 // pred_check_branch
        %451 = sbr.rel (%p449) target = $region36
      $region35: #{prototype_span_classification.1} parent=31 // pred_region
        _
      $region36: #{prototype_span_classification.1} parent=31 // pred_fallthru
        _
    $region32: #{prototype_span_classification.1} parent=5 // pred_fallthru
      _
    %p452 = scmp.le.s32.totalorder 2, %s9
    // Predicated region
    $region37: #{prototype_span_classification.1} parent=5 // pred_check
      %p453 = pneg %p452
    $region38: #{prototype_span_classification.1} parent=5 // pred_check_branch
      %455 = sbr.rel (%p453) target = $region40
    $region39: #{prototype_span_classification.1} parent=5 // pred_region
      %s456 = ssub.s32 %s9, 2
      // Predicated region
      $region41: #{prototype_span_classification.1} parent=39 // pred_check
        %p457 = pneg %p116
      $region42: #{prototype_span_classification.1} parent=39 // pred_check_branch
        %459 = sbr.rel (%p457) target = $region44
      $region43: #{prototype_span_classification.1} parent=39 // pred_region
        %p460 = scmp.lt.s32.totalorder %s15, 1
        %s461 = scalar_select %p460, %s15, 1
        %s462 = smul.addr %s461, 8
        %s463 = scalar_lea.vmem %s3, %s462
      $region44: #{prototype_span_classification.1} parent=39 // pred_fallthru
        _
    $region40: #{prototype_span_classification.1} parent=5 // pred_fallthru
      _
  $region6: #{prototype_span_classification.1} parent=0 // loop_footer
    %s13 = sadd.s32 1, %s9
  $region7: #{prototype_span_classification.1} parent=0 // loop_footer_branch
    %8 = sbr.rel target = $region3
  $region8: #{prototype_span_classification.1} parent=0 // loop_exit
    _

</llo_original>
